<compile_context>
chip_gen: v7x
topology: tpu7x:2x2x1
jax: 0.10.0
libtpu: 0.0.40
codegen_flags: <defaults>
</compile_context>

<pallas_src>
import functools

import jax
import jax.numpy as jnp
from jax import lax
from jax.experimental import pallas as pl
from jax.experimental.pallas import tpu as pltpu

MARGIN = 0.5
_LANE = 128
_SUBLANE = 8


def _round_up(x, m):
    return (x + m - 1) // m * m


def _contrastive_kernel(t_col_ref, t_row_ref, m12_ref, out_ref, *,
                        n_true, d_pad, margin):
    n_pad = t_col_ref.shape[0]

    t_col = t_col_ref[...]                          # (n_pad, 1)  f32 labels
    t_row = t_row_ref[...]                          # (1, n_pad)  f32 labels
    m12 = m12_ref[...]                              # (n_pad, 2*d_pad) = [m1 | m2]

    # ---- label-equality mask (VPU) + validity mask for padded rows/cols ----
    row_id = lax.broadcasted_iota(jnp.int32, (n_pad, n_pad), 0)
    col_id = lax.broadcasted_iota(jnp.int32, (n_pad, n_pad), 1)
    label = (t_col == t_row).astype(jnp.float32)                # (n_pad, n_pad)
    padded = n_pad != n_true
    if padded:
        vmask = jnp.logical_and(row_id < n_true,
                                col_id < n_true).astype(jnp.float32)
        label = label * vmask

    # ---- per-sample class means for both modalities: ONE MXU matmul ----
    counts = jnp.sum(label, axis=1, keepdims=True)              # (n_pad, 1)
    inv_counts = 1.0 / jnp.maximum(counts, 1.0)                 # exact (keeps 1e-4 tol)
    centers_cat = lax.dot_general(
        label, m12, (((1,), (0,)), ((), ())),
        preferred_element_type=jnp.float32) * inv_counts        # (n_pad, 2*d_pad)
    centersR = centers_cat[:, :d_pad]
    centersT = centers_cat[:, d_pad:]
    centers = (centersR + centersT) * 0.5

    # ---- both distance matrices + centers norms : ONE MXU matmul ----
    rt = jnp.concatenate([centersR, centersT], axis=0)          # (2n_pad, d_pad)
    stacked = jnp.concatenate([rt, centers], axis=0)            # (3n_pad, d_pad)
    gram = lax.dot_general(
        stacked, centers, (((1,), (1,)), ((), ())),
        preferred_element_type=jnp.float32)                     # (3n_pad, n_pad)
    ab = gram[:2 * n_pad]                                       # [R;T] @ C^T
    gram_cc = gram[2 * n_pad:]                                  # C @ C^T
    eye = (row_id == col_id).astype(jnp.float32)
    c2_row = jnp.sum(gram_cc * eye, axis=0, keepdims=True)      # (1, n_pad), hoisted once
    a2 = jnp.sum(rt * rt, axis=1, keepdims=True)                # (2n_pad, 1)

    dsq = jnp.maximum(a2 + c2_row - 2.0 * ab, 1e-12)            # clamped squared dist
    dist = jnp.sqrt(dsq)                                        # only for margin term

    # ---- contrastive loss over the stacked (2n, n) result ----
    label2 = jnp.concatenate([label, label], axis=0)            # (2n_pad, n_pad)
    pos = label2 * dsq                                          # == label * sqrt(dsq)^2
    hinge = jnp.maximum(margin - dist, 0.0)
    if padded:
        vmask2 = jnp.concatenate([vmask, vmask], axis=0)
        neg = (vmask2 - label2) * (hinge * hinge)
    else:
        neg = (1.0 - label2) * (hinge * hinge)

    per_elem = pos + neg
    total = jnp.sum(jnp.sum(per_elem, axis=1, keepdims=True),
                    axis=0, keepdims=True)                      # (1, 1)
    # (loss1 + loss2) == sum over the stacked block / true n^2
    out_ref[...] = total * (1.0 / float(n_true * n_true))


def _pad_to(x, rows, cols):
    return jnp.pad(x, ((0, rows - x.shape[0]), (0, cols - x.shape[1])))


def cross_modal_contrastive_loss7(modal1_inputs, modal2_inputs, targets,
                                  margin=MARGIN):
    """Matches Cross_modal_ContrastiveLoss7.forward; returns (loss, 0)."""
    m1 = modal1_inputs.astype(jnp.float32)
    m2 = modal2_inputs.astype(jnp.float32)
    n, d = m1.shape
    n_pad = _round_up(max(n, 1), _SUBLANE)
    d_pad = _round_up(max(d, 1), _LANE)

    # Lane/sublane-aligned, feature-concatenated inputs (zero padding is exact:
    # it changes no norms, dot products, or class means).
    m12 = jnp.concatenate([_pad_to(m1, n_pad, d_pad),
                           _pad_to(m2, n_pad, d_pad)], axis=1)   # (n_pad, 2*d_pad)

    t = targets.astype(jnp.float32)
    t = jnp.pad(t, (0, n_pad - n), constant_values=-1.0)
    t_col = t[:, None]                                           # (n_pad, 1)
    t_row = t[None, :]                                           # (1, n_pad)

    kernel = functools.partial(_contrastive_kernel,
                               n_true=n, d_pad=d_pad, margin=float(margin))
    loss = pl.pallas_call(
        kernel,
        out_shape=jax.ShapeDtypeStruct((1, 1), jnp.float32),
        in_specs=[
            pl.BlockSpec(memory_space=pltpu.MemorySpace.VMEM),
            pl.BlockSpec(memory_space=pltpu.MemorySpace.VMEM),
            pl.BlockSpec(memory_space=pltpu.MemorySpace.VMEM),
        ],
        # (1,1) scalar result kept as a VMEM block (robust lowering; avoids a
        # vector->scalar extract that an SMEM scalar output would require).
        out_specs=pl.BlockSpec(memory_space=pltpu.MemorySpace.VMEM),
    )(t_col, t_row, m12)
    return loss[0, 0], 0


def _reference_jax(modal1_inputs, modal2_inputs, targets, margin=MARGIN):
    """Pure-JAX reference mirroring the PyTorch module."""
    mask = (targets[:, None] == targets[None, :]).astype(jnp.float32)
    counts = jnp.sum(mask, axis=1, keepdims=True)
    centersR = (mask @ modal1_inputs) / counts
    centersT = (mask @ modal2_inputs) / counts
    centers = (centersR + centersT) / 2.0

    def dist(a, b):
        a2 = jnp.sum(a * a, axis=1, keepdims=True)
        b2 = jnp.sum(b * b, axis=1, keepdims=True)
        d2 = a2 + b2.T - 2.0 * (a @ b.T)
        return jnp.sqrt(jnp.maximum(d2, 1e-12))

    d1 = dist(centersR, centers)
    d2 = dist(centersT, centers)

    def contrastive(dd):
        return jnp.mean(mask * dd ** 2
                        + (1.0 - mask) * jnp.maximum(margin - dd, 0.0) ** 2)

    return contrastive(d1) + contrastive(d2)


if __name__ == "__main__":
    key = jax.random.PRNGKey(0)
    k1, k2, k3 = jax.random.split(key, 3)

    # Case 1: n=8, d=32 (n already sublane-aligned; d zero-padded to 128).
    n, d = 8, 32
    modal1 = jax.random.normal(k1, (n, d), dtype=jnp.float32)
    modal2 = jax.random.normal(k2, (n, d), dtype=jnp.float32)
    targets = jax.random.randint(k3, (n,), 0, 3, dtype=jnp.int32)

    loss, zero = cross_modal_contrastive_loss7(modal1, modal2, targets)
    loss = jax.block_until_ready(loss)
    ref = jax.block_until_ready(_reference_jax(modal1, modal2, targets))
    assert jnp.allclose(loss, ref, rtol=1e-4, atol=1e-4), (loss, ref)

    # Case 2: exercises the n-padding path (n=6 -> 8) with mean correction.
    k4, k5, k6 = jax.random.split(k3, 3)
    n2, d2 = 6, 20
    m1b = jax.random.normal(k4, (n2, d2), dtype=jnp.float32)
    m2b = jax.random.normal(k5, (n2, d2), dtype=jnp.float32)
    tb = jax.random.randint(k6, (n2,), 0, 2, dtype=jnp.int32)
    loss_b, _ = cross_modal_contrastive_loss7(m1b, m2b, tb)
    loss_b = jax.block_until_ready(loss_b)
    ref_b = jax.block_until_ready(_reference_jax(m1b, m2b, tb))
    assert jnp.allclose(loss_b, ref_b, rtol=1e-4, atol=1e-4), (loss_b, ref_b)

    print("KERNEL_OK")
</pallas_src>

<mosaic_0001>
module attributes {stable_mosaic.version = 11 : i64} {
  func.func @_contrastive_kernel(%arg0: memref<8x1xf32, #tpu.memory_space<vmem>>, %arg1: memref<1x8xf32, #tpu.memory_space<vmem>>, %arg2: memref<8x256xf32, #tpu.memory_space<vmem>>, %arg3: memref<1x1xf32, #tpu.memory_space<vmem>>) attributes {dimension_semantics = [], scalar_prefetch = 0 : i64, scratch_operands = 0 : i64, tpu.core_type = #tpu.core_type<tc>} {
    %c0 = arith.constant 0 : index
    %c0_0 = arith.constant 0 : index
    %0 = vector.load %arg0[%c0, %c0_0] : memref<8x1xf32, #tpu.memory_space<vmem>>, vector<8x1xf32>
    %c0_1 = arith.constant 0 : index
    %c0_2 = arith.constant 0 : index
    %1 = vector.load %arg1[%c0_1, %c0_2] : memref<1x8xf32, #tpu.memory_space<vmem>>, vector<1x8xf32>
    %c0_3 = arith.constant 0 : index
    %c0_4 = arith.constant 0 : index
    %2 = vector.load %arg2[%c0_3, %c0_4] : memref<8x256xf32, #tpu.memory_space<vmem>>, vector<8x256xf32>
    %3 = tpu.iota {dimensions = array<i32: 0>} : vector<8x8xi32>
    %4 = tpu.iota {dimensions = array<i32: 1>} : vector<8x8xi32>
    %5 = vector.broadcast %0 : vector<8x1xf32> to vector<8x8xf32>
    %6 = vector.broadcast %1 : vector<1x8xf32> to vector<8x8xf32>
    %7 = arith.cmpf oeq, %5, %6 : vector<8x8xf32>
    %8 = arith.extui %7 : vector<8x8xi1> to vector<8x8xi32>
    %9 = arith.sitofp %8 : vector<8x8xi32> to vector<8x8xf32>
    %cst = arith.constant dense<0.000000e+00> : vector<8xf32>
    %10 = vector.multi_reduction <add>, %9, %cst [1] : vector<8x8xf32> to vector<8xf32>
    %11 = vector.shape_cast %10 : vector<8xf32> to vector<8x1xf32>
    %cst_5 = arith.constant 1.000000e+00 : f32
    %12 = vector.broadcast %cst_5 : f32 to vector<8x1xf32>
    %13 = arith.maximumf %11, %12 : vector<8x1xf32>
    %cst_6 = arith.constant 1.000000e+00 : f32
    %14 = vector.broadcast %cst_6 : f32 to vector<8x1xf32>
    %15 = arith.divf %14, %13 : vector<8x1xf32>
    %cst_7 = arith.constant dense<0.000000e+00> : vector<8x256xf32>
    %16 = tpu.matmul %9, %2, %cst_7 {dimension_numbers = #tpu.dot_dimension_numbers<[1], [0], [0], [1], [0, 0, 1, 1], [], []>} : vector<8x8xf32>, vector<8x256xf32>, vector<8x256xf32> -> vector<8x256xf32>
    %17 = vector.broadcast %15 : vector<8x1xf32> to vector<8x256xf32>
    %18 = arith.mulf %16, %17 : vector<8x256xf32>
    %19 = vector.extract_strided_slice %18 {offsets = [0, 0], sizes = [8, 128], strides = [1, 1]} : vector<8x256xf32> to vector<8x128xf32>
    %20 = vector.extract_strided_slice %18 {offsets = [0, 128], sizes = [8, 128], strides = [1, 1]} : vector<8x256xf32> to vector<8x128xf32>
    %21 = arith.addf %19, %20 : vector<8x128xf32>
    %cst_8 = arith.constant 5.000000e-01 : f32
    %22 = vector.broadcast %cst_8 : f32 to vector<8x128xf32>
    %23 = arith.mulf %21, %22 : vector<8x128xf32>
    %24 = tpu.concatenate %19, %20 in 0 : vector<8x128xf32>, vector<8x128xf32> -> vector<16x128xf32>
    %25 = tpu.concatenate %24, %23 in 0 : vector<16x128xf32>, vector<8x128xf32> -> vector<24x128xf32>
    %cst_9 = arith.constant dense<0.000000e+00> : vector<24x8xf32>
    %26 = tpu.matmul %25, %23, %cst_9 {dimension_numbers = #tpu.dot_dimension_numbers<[1], [1], [0], [0], [0, 0, 1, 0], [], []>} : vector<24x128xf32>, vector<8x128xf32>, vector<24x8xf32> -> vector<24x8xf32>
    %27 = vector.extract_strided_slice %26 {offsets = [0, 0], sizes = [16, 8], strides = [1, 1]} : vector<24x8xf32> to vector<16x8xf32>
    %28 = vector.extract_strided_slice %26 {offsets = [16, 0], sizes = [8, 8], strides = [1, 1]} : vector<24x8xf32> to vector<8x8xf32>
    %29 = arith.cmpi eq, %3, %4 : vector<8x8xi32>
    %30 = arith.extui %29 : vector<8x8xi1> to vector<8x8xi32>
    %31 = arith.sitofp %30 : vector<8x8xi32> to vector<8x8xf32>
    %32 = arith.mulf %28, %31 : vector<8x8xf32>
    %cst_10 = arith.constant dense<0.000000e+00> : vector<8xf32>
    %33 = vector.multi_reduction <add>, %32, %cst_10 [0] : vector<8x8xf32> to vector<8xf32>
    %34 = vector.shape_cast %33 : vector<8xf32> to vector<1x8xf32>
    %35 = arith.mulf %24, %24 : vector<16x128xf32>
    %cst_11 = arith.constant dense<0.000000e+00> : vector<16xf32>
    %36 = vector.multi_reduction <add>, %35, %cst_11 [1] : vector<16x128xf32> to vector<16xf32>
    %37 = vector.shape_cast %36 : vector<16xf32> to vector<16x1xf32>
    %38 = vector.broadcast %37 : vector<16x1xf32> to vector<16x8xf32>
    %39 = vector.broadcast %34 : vector<1x8xf32> to vector<16x8xf32>
    %40 = arith.addf %38, %39 : vector<16x8xf32>
    %cst_12 = arith.constant 2.000000e+00 : f32
    %41 = vector.broadcast %cst_12 : f32 to vector<16x8xf32>
    %42 = arith.mulf %41, %27 : vector<16x8xf32>
    %43 = arith.subf %40, %42 : vector<16x8xf32>
    %cst_13 = arith.constant 9.99999996E-13 : f32
    %44 = vector.broadcast %cst_13 : f32 to vector<16x8xf32>
    %45 = arith.maximumf %43, %44 : vector<16x8xf32>
    %46 = math.sqrt %45 : vector<16x8xf32>
    %47 = tpu.concatenate %9, %9 in 0 : vector<8x8xf32>, vector<8x8xf32> -> vector<16x8xf32>
    %48 = arith.mulf %47, %45 : vector<16x8xf32>
    %cst_14 = arith.constant 5.000000e-01 : f32
    %49 = vector.broadcast %cst_14 : f32 to vector<16x8xf32>
    %50 = arith.subf %49, %46 : vector<16x8xf32>
    %cst_15 = arith.constant 0.000000e+00 : f32
    %51 = vector.broadcast %cst_15 : f32 to vector<16x8xf32>
    %52 = arith.maximumf %50, %51 : vector<16x8xf32>
    %cst_16 = arith.constant 1.000000e+00 : f32
    %53 = vector.broadcast %cst_16 : f32 to vector<16x8xf32>
    %54 = arith.subf %53, %47 : vector<16x8xf32>
    %55 = arith.mulf %52, %52 : vector<16x8xf32>
    %56 = arith.mulf %54, %55 : vector<16x8xf32>
    %57 = arith.addf %48, %56 : vector<16x8xf32>
    %cst_17 = arith.constant dense<0.000000e+00> : vector<16xf32>
    %58 = vector.multi_reduction <add>, %57, %cst_17 [1] : vector<16x8xf32> to vector<16xf32>
    %59 = vector.shape_cast %58 : vector<16xf32> to vector<16x1xf32>
    %cst_18 = arith.constant dense<0.000000e+00> : vector<1xf32>
    %60 = vector.multi_reduction <add>, %59, %cst_18 [0] : vector<16x1xf32> to vector<1xf32>
    %61 = vector.shape_cast %60 : vector<1xf32> to vector<1x1xf32>
    %cst_19 = arith.constant 1.562500e-02 : f32
    %62 = vector.broadcast %cst_19 : f32 to vector<1x1xf32>
    %63 = arith.mulf %61, %62 : vector<1x1xf32>
    %c0_20 = arith.constant 0 : index
    %c0_21 = arith.constant 0 : index
    %64 = vector.load %arg3[%c0_20, %c0_21] : memref<1x1xf32, #tpu.memory_space<vmem>>, vector<1x1xf32>
    tpu.vector_store %arg3[%c0_20, %c0_21], %63 {strides = array<i32>} : memref<1x1xf32, #tpu.memory_space<vmem>>, vector<1x1xf32>,
    return
  }
}

</mosaic_0001>

<llo_original>
// kernel: tpu_custom_call.1
$region0: #{tpu_custom_call.1}
  #allocation0 [shape = 'u32[]', space=smem, size = 0x4, offset = 0x4, fixed_abs, tag = 'smem constant byte address 0x4 - core index']
  #allocation1 [shape = 'u32[144,128]{1,0:T(1,128)}', space=vmem, size = 0x12000, scoped, tag = 'internal scratch']
  %s0 = inlined_call_operand.vmem [shape: f32[8,1], index: 0, kind: input, shape index: {}]
  %s1 = inlined_call_operand.hbm [shape: f32[1,8], index: 1, kind: input, shape index: {}]
  %s2 = inlined_call_operand.vmem [shape: f32[8,256], index: 2, kind: input, shape index: {}]
  %s3 = inlined_call_operand.hbm [shape: f32[1,1], index: 3, kind: output, shape index: {}]
  %s4 = sld [smem:[#allocation0]]
  $region26: #{tpu_custom_call.1} parent=0
    _
  %s6 = ssub.s32 1, %s4
  %s7 = scalar_select 0, %s6, %s4
  $region1: #{tpu_custom_call.1} parent=0
    #allocation2 [shape = 'u8[512]{0}', space=vmem, size = 0x400, scoped, tag = 'input window, operand 1, single buffered']
    #allocation3 [shape = 's32[1]{0}', space=sflag, size = 0x4, scoped, tag = 'scoped memory for tpu_custom_call.1']
    #allocation4 [shape = 's32[1]{0}', space=sflag, size = 0x4, scoped, tag = 'scoped memory for tpu_custom_call.1']
    #allocation5 [shape = 'u8[512]{0}', space=vmem, size = 0x400, scoped, tag = 'output window, operand 0, single buffered']
    %8 = vsyncpa [#allocation3], 0
    %9 = vsyncpa [#allocation4], 0
    // Predicated region
    $region2: #{tpu_custom_call.1} parent=1 // pred_check
      _
    $region3: #{tpu_custom_call.1} parent=1 // pred_check_branch
      %11 = sbr.rel (0) target = $region5
    $region4: #{tpu_custom_call.1} parent=1 // pred_region
      _
    $region5: #{tpu_custom_call.1} parent=1 // pred_fallthru
      _
    // Predicated region
    $region6: #{tpu_custom_call.1} parent=1 // pred_check
      _
    $region7: #{tpu_custom_call.1} parent=1 // pred_check_branch
      %13 = sbr.rel (0) target = $region9
    $region8: #{tpu_custom_call.1} parent=1 // pred_region
      %s15 = ssub.s32 16, 16
      %16 = vsyncadd [#allocation3], %s15
      %s18 = sshll.u32 [#allocation2], 4
      %s19 = int_to_ptr.vmem [resolvable:$true] %s18
      %21 = dma.hbm_to_vmem [thread:$0]  %s1, 16, %s19, [#allocation3]
    $region9: #{tpu_custom_call.1} parent=1 // pred_fallthru
      _
    // Predicated region
    $region10: #{tpu_custom_call.1} parent=1 // pred_check
      _
    $region11: #{tpu_custom_call.1} parent=1 // pred_check_branch
      %23 = sbr.rel (0) target = $region13
    $region12: #{tpu_custom_call.1} parent=1 // pred_region
      _
    $region13: #{tpu_custom_call.1} parent=1 // pred_fallthru
      _
    // Predicated region
    $region14: #{tpu_custom_call.1} parent=1 // pred_check
      _
    $region15: #{tpu_custom_call.1} parent=1 // pred_check_branch
      %25 = sbr.rel (0) target = $region17
    $region16: #{tpu_custom_call.1} parent=1 // pred_region
      %26 = dma.done [#allocation3], 16
    $region17: #{tpu_custom_call.1} parent=1 // pred_fallthru
      _
    %v27 = vld [vmem:[%s0] sm:$0xff]
    %v28 = vld [vmem:[#allocation2] sm:$0x1]
    %v29 = vld [vmem:[%s2] sm:$0xff]
    %v30 = vld [vmem:[%s2 + $0x8] sm:$0xff]
    %v31 = vlaneseq
    %v32 = vshrl.u32 %v31, 7
    %v33 = vlaneseq
    %v34 = vand.u32 %v33, 127
    %36 = vset.pattern.permute.xlu0 0
    %37 = vperm.xlu0 %36, %v27
    %v38 = vpop.permute.xlu0 %37
    %v41 = vlaneseq
    %v42 = vshrl.u32 %v41, 7
    %v43 = vsub.s32 0, %v42
    %v44 = vrot.slane %v28, %v43
    %vm46 = vcmp.eq.f32.partialorder %v38, %v44
    %v47 = vsel %vm46, 1, 0
    %v48 = vcvt.s32.f32 %v47
    %vm49 = vcmask 64512
    %v50 = vsel %vm49, %v48, 0.0
    %51 = vadd.xlane.f32.xlu0 %v50
    %v52 = vpop.xlane.xlu0 %51
    %v53 = vmax.f32 %v52, 1.0
    %v54 = vrcp.pop %v53
    %v55 = vmul.f32 1.0, %v54
    %v57 = vsel %vm49, %v48, 0
    %59 = vmatprep.subr.mxu0 %v30
    %60 = vmatpush1.msra.mxu0 %v29
    %61 = vmatprep.subr.mxu0 0.0
    %62 = vmatpush1.msra.mxu0 0.0
    %63 = vmatprep.subr.mxu0 0.0
    %64 = vmatpush1.msra.mxu0 0.0
    %65 = vmatprep.subr.mxu0 0.0
    %66 = vmatpush1.msra.mxu0 0.0
    %67 = vmatprep.subr.mxu0 0.0
    %68 = vmatpush1.msra.mxu0 0.0
    %69 = vmatprep.subr.mxu0 0.0
    %70 = vmatpush1.msra.mxu0 0.0
    %71 = vmatprep.subr.mxu0 0.0
    %72 = vmatpush1.msra.mxu0 0.0
    %73 = vmatprep.subr.mxu0 0.0
    %74 = vmatpush1.msra.mxu0 0.0
    %75 = vmatprep.subr.mxu0 0.0
    %76 = vmatpush1.msra.mxu0 0.0
    %77 = vmatprep.subr.mxu0 0.0
    %78 = vmatpush1.msra.mxu0 0.0
    %79 = vmatprep.subr.mxu0 0.0
    %80 = vmatpush1.msra.mxu0 0.0
    %81 = vmatprep.subr.mxu0 0.0
    %82 = vmatpush1.msra.mxu0 0.0
    %83 = vmatprep.subr.mxu0 0.0
    %84 = vmatpush1.msra.mxu0 0.0
    %85 = vmatprep.subr.mxu0 0.0
    %86 = vmatpush1.msra.mxu0 0.0
    %87 = vmatprep.subr.mxu0 0.0
    %88 = vmatpush1.msra.mxu0 0.0
    %89 = vmatprep.subr.mxu0 0.0
    %90 = vmatpush1.msra.mxu0 0.0
    %91 = vmatprep.subr.mxu0 0.0
    %92 = vmatpush1.msra.mxu0 0.0
    %93 = vmatprep.subr.mxu0 0.0
    %94 = vmatpush1.msra.mxu0 0.0
    %95 = vmatprep.subr.mxu0 0.0
    %96 = vmatpush1.msra.mxu0 0.0
    %97 = vmatprep.subr.mxu0 0.0
    %98 = vmatpush1.msra.mxu0 0.0
    %99 = vmatprep.subr.mxu0 0.0
    %100 = vmatpush1.msra.mxu0 0.0
    %101 = vmatprep.subr.mxu0 0.0
    %102 = vmatpush1.msra.mxu0 0.0
    %103 = vmatprep.subr.mxu0 0.0
    %104 = vmatpush1.msra.mxu0 0.0
    %105 = vmatprep.subr.mxu0 0.0
    %106 = vmatpush1.msra.mxu0 0.0
    %107 = vmatprep.subr.mxu0 0.0
    %108 = vmatpush1.msra.mxu0 0.0
    %109 = vmatprep.subr.mxu0 0.0
    %110 = vmatpush1.msra.mxu0 0.0
    %111 = vmatprep.subr.mxu0 0.0
    %112 = vmatpush1.msra.mxu0 0.0
    %113 = vmatprep.subr.mxu0 0.0
    %114 = vmatpush1.msra.mxu0 0.0
    %115 = vmatprep.subr.mxu0 0.0
    %116 = vmatpush1.msra.mxu0 0.0
    %117 = vmatprep.subr.mxu0 0.0
    %118 = vmatpush1.msra.mxu0 0.0
    %119 = vmatprep.subr.mxu0 0.0
    %120 = vmatpush1.msra.mxu0 0.0
    %121 = vmatprep.subr.mxu0 0.0
    %122 = vmatpush1.msra.mxu0 0.0
    %123 = vmatprep.mubr.f32.mxu0 0.0
    %124 = vmatmul.mubr.f32.gmra.mrb[0].mxu0 %v57
    %v125 = vpop.f32.mrb[0].mxu0
    %v126 = vadd.f32 0.0, %v125
    %v127 = vpop.f32.mrb[0].mxu0
    %v128 = vadd.f32 0.0, %v127
    %129 = vdwg.mxu0
    %v130 = vmul.f32 %v126, %v55
    %v131 = vmul.f32 %v128, %v55
    %v132 = vadd.f32 %v130, %v131
    %v133 = vmul.f32 %v132, 0.5
    %134 = vmatprep.subr.mxu0 0.0
    %135 = vmatpush1.xpose.msra.mxu0 %v133
    %136 = vmatprep.subr.mxu0 0.0
    %137 = vmatpush1.xpose.msra.mxu0 0.0
    %138 = vmatprep.subr.mxu0 0.0
    %139 = vmatpush1.xpose.msra.mxu0 0.0
    %140 = vmatprep.subr.mxu0 0.0
    %141 = vmatpush1.xpose.msra.mxu0 0.0
    %142 = vmatprep.subr.mxu0 0.0
    %143 = vmatpush1.xpose.msra.mxu0 0.0
    %144 = vmatprep.subr.mxu0 0.0
    %145 = vmatpush1.xpose.msra.mxu0 0.0
    %146 = vmatprep.subr.mxu0 0.0
    %147 = vmatpush1.xpose.msra.mxu0 0.0
    %148 = vmatprep.subr.mxu0 0.0
    %149 = vmatpush1.xpose.msra.mxu0 0.0
    %150 = vmatprep.subr.mxu0 0.0
    %151 = vmatpush1.xpose.msra.mxu0 0.0
    %152 = vmatprep.subr.mxu0 0.0
    %153 = vmatpush1.xpose.msra.mxu0 0.0
    %154 = vmatprep.subr.mxu0 0.0
    %155 = vmatpush1.xpose.msra.mxu0 0.0
    %156 = vmatprep.subr.mxu0 0.0
    %157 = vmatpush1.xpose.msra.mxu0 0.0
    %158 = vmatprep.subr.mxu0 0.0
    %159 = vmatpush1.xpose.msra.mxu0 0.0
    %160 = vmatprep.subr.mxu0 0.0
    %161 = vmatpush1.xpose.msra.mxu0 0.0
    %162 = vmatprep.subr.mxu0 0.0
    %163 = vmatpush1.xpose.msra.mxu0 0.0
    %164 = vmatprep.subr.mxu0 0.0
    %165 = vmatpush1.xpose.msra.mxu0 0.0
    %166 = vmatprep.subr.mxu0 0.0
    %167 = vmatpush1.xpose.msra.mxu0 0.0
    %168 = vmatprep.subr.mxu0 0.0
    %169 = vmatpush1.xpose.msra.mxu0 0.0
    %170 = vmatprep.subr.mxu0 0.0
    %171 = vmatpush1.xpose.msra.mxu0 0.0
    %172 = vmatprep.subr.mxu0 0.0
    %173 = vmatpush1.xpose.msra.mxu0 0.0
    %174 = vmatprep.subr.mxu0 0.0
    %175 = vmatpush1.xpose.msra.mxu0 0.0
    %176 = vmatprep.subr.mxu0 0.0
    %177 = vmatpush1.xpose.msra.mxu0 0.0
    %178 = vmatprep.subr.mxu0 0.0
    %179 = vmatpush1.xpose.msra.mxu0 0.0
    %180 = vmatprep.subr.mxu0 0.0
    %181 = vmatpush1.xpose.msra.mxu0 0.0
    %182 = vmatprep.subr.mxu0 0.0
    %183 = vmatpush1.xpose.msra.mxu0 0.0
    %184 = vmatprep.subr.mxu0 0.0
    %185 = vmatpush1.xpose.msra.mxu0 0.0
    %186 = vmatprep.subr.mxu0 0.0
    %187 = vmatpush1.xpose.msra.mxu0 0.0
    %188 = vmatprep.subr.mxu0 0.0
    %189 = vmatpush1.xpose.msra.mxu0 0.0
    %190 = vmatprep.subr.mxu0 0.0
    %191 = vmatpush1.xpose.msra.mxu0 0.0
    %192 = vmatprep.subr.mxu0 0.0
    %193 = vmatpush1.xpose.msra.mxu0 0.0
    %194 = vmatprep.subr.mxu0 0.0
    %195 = vmatpush1.xpose.msra.mxu0 0.0
    %196 = vmatprep.subr.mxu0 0.0
    %197 = vmatpush1.xpose.msra.mxu0 0.0
    %198 = vmatprep.mubr.f32.mxu0 0.0
    %199 = vmatmul.mubr.f32.gmra.mrb[0].mxu0 %v130
    %v200 = vpop.f32.mrb[0].mxu0
    %v201 = vadd.f32 0.0, %v200
    %v202 = vpop.f32.mrb[0].mxu0
    %203 = vmatprep.mubr.f32.mxu0 0.0
    %204 = vmatmul.mubr.f32.gmra.mrb[0].mxu0 %v131
    %v205 = vpop.f32.mrb[0].mxu0
    %v206 = vadd.f32 0.0, %v205
    %v207 = vpop.f32.mrb[0].mxu0
    %208 = vmatprep.mubr.f32.mxu0 0.0
    %209 = vmatmul.mubr.f32.gmra.mrb[0].mxu0 %v133
    %v210 = vpop.f32.mrb[0].mxu0
    %v211 = vadd.f32 0.0, %v210
    %v212 = vpop.f32.mrb[0].mxu0
    %213 = vdwg.mxu0
    %vm214 = vcmp.eq.s32.totalorder %v32, %v34
    %v215 = vsel %vm214, 1, 0
    %v216 = vcvt.s32.f32 %v215
    %v217 = vmul.f32 %v211, %v216
    %v218 = vsel %vm49, %v217, 0.0
    %v219 = vrot.slane %v218, 4
    %v220 = vadd.f32 %v218, %v219
    %v221 = vrot.slane %v220, 2
    %v222 = vadd.f32 %v220, %v221
    %v223 = vrot.slane %v222, 1
    %v224 = vadd.f32 %v222, %v223
    %v225 = vmul.f32 %v130, %v130
    %v226 = vmul.f32 %v131, %v131
    %227 = vadd.xlane.f32.xlu0 %v225
    %v228 = vpop.xlane.xlu0 %227
    %229 = vadd.xlane.f32.xlu0 %v226
    %v230 = vpop.xlane.xlu0 %229
    %v231 = vadd.f32 %v228, %v224
    %v232 = vadd.f32 %v230, %v224
    %v233 = vmul.f32 %v201, 2.0
    %v234 = vmul.f32 %v206, 2.0
    %v235 = vsub.f32 %v231, %v233
    %v236 = vsub.f32 %v232, %v234
    %v237 = vmax.f32 %v235, 1e-12
    %v238 = vmax.f32 %v236, 1e-12
    %v239 = vrsqrt.pop %v237
    %v240 = vmul.f32 %v237, %v239
    %vm241 = vcmp.eq.f32.partialorder %v237, inf
    %v242 = vsel %vm241, %v237, %v240
    %vm243 = vcmp.eq.f32.partialorder %v237, 0.0
    %v244 = vand.u32 %v237, 2147483648
    %v245 = vsel %vm243, %v244, %v242
    %v246 = vrsqrt.pop %v238
    %v247 = vmul.f32 %v238, %v246
    %vm248 = vcmp.eq.f32.partialorder %v238, inf
    %v249 = vsel %vm248, %v238, %v247
    %vm250 = vcmp.eq.f32.partialorder %v238, 0.0
    %v251 = vand.u32 %v238, 2147483648
    %v252 = vsel %vm250, %v251, %v249
    %v253 = vmul.f32 %v48, %v237
    %v254 = vmul.f32 %v48, %v238
    %v255 = vsub.f32 0.5, %v245
    %v256 = vsub.f32 0.5, %v252
    %v257 = vmax.f32 %v255, 0.0
    %v258 = vmax.f32 %v256, 0.0
    %v259 = vsub.f32 1.0, %v48
    %v260 = vmul.f32 %v257, %v257
    %v261 = vmul.f32 %v258, %v258
    %v262 = vmul.f32 %v259, %v260
    %v263 = vmul.f32 %v259, %v261
    %v264 = vadd.f32 %v253, %v262
    %v265 = vadd.f32 %v254, %v263
    %v266 = vsel %vm49, %v264, 0.0
    %267 = vadd.xlane.f32.xlu0 %v266
    %v268 = vpop.xlane.xlu0 %267
    %v269 = vsel %vm49, %v265, 0.0
    %270 = vadd.xlane.f32.xlu0 %v269
    %v271 = vpop.xlane.xlu0 %270
    %v272 = vadd.f32 %v268, %v271
    %v273 = vrot.slane %v272, 4
    %v274 = vadd.f32 %v272, %v273
    %v275 = vrot.slane %v274, 2
    %v276 = vadd.f32 %v274, %v275
    %v277 = vrot.slane %v276, 1
    %v278 = vadd.f32 %v276, %v277
    %v279 = vmul.f32 %v278, 0.015625
    %vm280 = vcmask 0
    %281 = vst.msk [vmem:[#allocation5] sm:$0x1] %vm280, %v279
    // Predicated region
    $region18: #{tpu_custom_call.1} parent=1 // pred_check
      _
    $region19: #{tpu_custom_call.1} parent=1 // pred_check_branch
      %283 = sbr.rel (0) target = $region21
    $region20: #{tpu_custom_call.1} parent=1 // pred_region
      %s285 = ssub.s32 16, 16
      %286 = vsyncadd [#allocation4], %s285
      %s288 = sshll.u32 [#allocation5], 4
      %s289 = int_to_ptr.vmem [resolvable:$true] %s288
      %291 = dma.vmem_to_hbm [thread:$0]  %s289, 16, %s3, [#allocation4]
    $region21: #{tpu_custom_call.1} parent=1 // pred_fallthru
      _
    // Predicated region
    $region22: #{tpu_custom_call.1} parent=1 // pred_check
      _
    $region23: #{tpu_custom_call.1} parent=1 // pred_check_branch
      %293 = sbr.rel (0) target = $region25
    $region24: #{tpu_custom_call.1} parent=1 // pred_region
      %294 = dma.done [#allocation4], 16
    $region25: #{tpu_custom_call.1} parent=1 // pred_fallthru
      _
    %295 = vsyncpa [#allocation3], 1
    %296 = vsyncpa [#allocation4], 1

</llo_original>
